<compile_context>
chip_gen: v5e
topology: v5e:2x2
jax: 0.10.0
libtpu: 0.0.40
codegen_flags: <defaults>
</compile_context>

<pallas_src>
import jax
import jax.numpy as jnp
import numpy as np
from jax import lax
from jax.experimental import pallas as pl
from jax.experimental.pallas import tpu as pltpu


# ---------------------------------------------------------------------------
# Fused Pallas kernel: per-half, resident (r, r) accumulators
#   gram[h] += sum_i w[h,i] * comb[h,:,:,i] (x) comb[h,:,:,i]   (batched over d+1)
#   cov[h]  += gram[h, 0]          (psi Gram)
#   dcov[h] += sum_{k>=1} gram[h, k]  (friction-scaled J J^T Gram)
# grid = (2 halves [parallel], row blocks [arbitrary reduction])
# ---------------------------------------------------------------------------
def _fused_gram_kernel(comb_ref, w_ref, cov_ref, dcov_ref):
    @pl.when(pl.program_id(1) == 0)
    def _():
        cov_ref[...] = jnp.zeros_like(cov_ref)
        dcov_ref[...] = jnp.zeros_like(dcov_ref)

    comb = comb_ref[0].astype(jnp.float32)     # (d+1, r, bn)  lane-dense samples
    w = w_ref[...].astype(jnp.float32)         # (1, 1, bn)    per-sample weights

    # Batched weighted Gram: contract the sample (lane) axis, batch over the
    # pseudo-descriptor axis (slice 0 = psi, slices 1..d = scaled J^T rows).
    gram = lax.dot_general(
        comb * w, comb,
        dimension_numbers=(((2,), (2,)), ((0,), (0,))),
        preferred_element_type=jnp.float32)    # (d+1, r, r)

    cov_ref[0] = cov_ref[0] + gram[0]
    dcov_ref[0] = dcov_ref[0] + jnp.sum(gram[1:], axis=0)


def _vmem_and_block(d, r, half_max, itemsize):
    """Generation-aware scoped-VMEM limit + row-block size (multiple of 128)."""
    try:
        vmem_cap = int(pltpu.get_tpu_info().vmem_capacity_bytes)
    except Exception:
        vmem_cap = 64 * 1024 * 1024                    # conservative (v7x TC)
    vmem_limit = min((vmem_cap * 3) // 4, 100 * 1024 * 1024)
    vmem_limit = max(vmem_limit, 32 * 1024 * 1024)

    r_pad = -(-r // 8) * 8                             # sublane padding of tiles
    comb_row = (d + 1) * r_pad * itemsize              # bytes/row, fused stream
    w_row = 8 * 4                                      # sublane-padded w row
    # 2x double-buffered inputs + 1 in-kernel (comb * w) intermediate.
    per_row = 3 * comb_row + 2 * w_row
    bn = int(vmem_limit * 0.7) // per_row
    bn = min(bn, 65536)
    bn = max(128, (bn // 128) * 128)
    bn = min(bn, -(-half_max // 128) * 128)            # never beyond one padded half
    return vmem_limit, bn


def fused_weighted_grams(comb2, w2, *, block_n, vmem_limit):
    """comb2: (2, d+1, r, S) fused psi/J^T stream (samples on lanes);
    w2: (2, 1, S); S % block_n == 0.

    Returns cov_raw, dcov_raw, each (2, r, r) float32:
      cov_raw[h]  = sum_i w[h,i] psi[h,i] (x) psi[h,i]
      dcov_raw[h] = sum_i w[h,i] G[h,i] @ G[h,i]^T   (G = friction-scaled J)
    """
    _, dp1, r, S = comb2.shape
    assert S % block_n == 0, (S, block_n)
    nb = S // block_n

    return pl.pallas_call(
        _fused_gram_kernel,
        out_shape=(jax.ShapeDtypeStruct((2, r, r), jnp.float32),
                   jax.ShapeDtypeStruct((2, r, r), jnp.float32)),
        grid_spec=pltpu.PrefetchScalarGridSpec(
            num_scalar_prefetch=0,
            grid=(2, nb),                               # (halves, row blocks)
            in_specs=[
                pl.BlockSpec((1, dp1, r, block_n), lambda h, i: (h, 0, 0, i)),
                pl.BlockSpec((1, 1, block_n), lambda h, i: (h, 0, i)),
            ],
            out_specs=[
                pl.BlockSpec((1, r, r), lambda h, i: (h, 0, 0)),
                pl.BlockSpec((1, r, r), lambda h, i: (h, 0, 0)),
            ]),
        compiler_params=pltpu.CompilerParams(
            # Half axis "parallel" (maps to the 2nd TensorCore on v7x, no-op on
            # v5e/v6e); row blocks are the resident-accumulator reduction axis.
            dimension_semantics=("parallel", "arbitrary"),
            vmem_limit_bytes=int(vmem_limit)),
    )(comb2, w2)


# ---------------------------------------------------------------------------
# Tiny tail on (r, r) matrices: plain JAX, traces via trace(A@B) = sum(A*B.T).
# ---------------------------------------------------------------------------
def _loss_tail(cov_X, cov_Y, dcov_X, dcov_Y, lambdas, eta, gamma):
    r = cov_X.shape[0]
    lamb2 = lambdas.astype(jnp.float32) ** 2            # (r,)
    A = cov_X * lamb2                                    # cov_X @ diag(lamb2)
    B = cov_Y * lamb2
    W1 = (eta * cov_X + dcov_X) * lamb2
    W2 = (eta * cov_Y + dcov_Y) * lamb2
    loss_ef = (0.5 * (jnp.sum(A * W2.T) + jnp.sum(B * W1.T))
               - jnp.trace(A) - jnp.trace(B))
    diff = jnp.eye(r, dtype=cov_X.dtype) - cov_X
    loss_ortho = gamma * jnp.sum(diff * diff)
    return loss_ef + loss_ortho, loss_ef, loss_ortho


# ---------------------------------------------------------------------------
# A small deterministic "model" (stands in for self.model): MLP  (..,D)->(..,R)
# ---------------------------------------------------------------------------
def init_model_params(key, d, hidden, r):
    k1, k2, k3, k4 = jax.random.split(key, 4)
    W1 = 0.3 * jax.random.normal(k1, (d, hidden), jnp.float32)
    b1 = 0.1 * jax.random.normal(k2, (hidden,), jnp.float32)
    W2 = 0.3 * jax.random.normal(k3, (hidden, r), jnp.float32)
    b2 = 0.1 * jax.random.normal(k4, (r,), jnp.float32)
    return (W1, b1, W2, b2)


def model_apply(params, x):
    W1, b1, W2, b2 = params
    h = jnp.tanh(x @ W1 + b1)
    return h @ W2 + b2


# ---------------------------------------------------------------------------
# GeneratorLoss.forward  (gradient_descriptors=None branch)
# ---------------------------------------------------------------------------
def generator_loss_forward(params, data, weights, lambdas, *,
                           eta, friction, gamma, cell,
                           block_n=None, stream_dtype=jnp.float32):
    n, d = data.shape
    r = int(lambdas.shape[0])
    n_X = n // 2
    n_Y = n - n_X
    half_max = max(n_X, n_Y)

    vmem_limit, auto_bn = _vmem_and_block(
        d, r, half_max, jnp.dtype(stream_dtype).itemsize)
    bn = auto_bn if block_n is None else int(block_n)    # block_n: multiple of 128
    S_pad = bn * int(pl.cdiv(half_max, bn))

    # Model forward + per-sample transposed Jacobian J^T only on TRUE samples;
    # forward-mode JVPs over the d basis vectors give exactly the
    # torch.autograd.grad values.  Fused per-sample layout: row 0 = psi,
    # rows 1..d = friction-scaled J^T.
    # TODO(synk): the autodiff itself has no in-kernel Pallas equivalent.
    scale = friction if cell is None else friction / cell
    eye_d = jnp.eye(d, dtype=jnp.float32)

    def per_sample_comb(x):                              # x: (d,)
        psi, f_lin = jax.linearize(lambda xi: model_apply(params, xi), x)
        jt = jax.vmap(f_lin)(eye_d)                      # (d, r) == J^T
        return jnp.concatenate([psi[None, :], jt * scale], axis=0)   # (d+1, r)

    # out_axes=2 -> samples land on the last (lane) axis directly: (d+1, r, n)
    comb_all = jax.vmap(per_sample_comb, out_axes=2)(data.astype(jnp.float32))

    def prep_half(x, n_h):                               # x: (d+1, r, n_h)
        return jnp.pad(x, ((0, 0), (0, 0), (0, S_pad - n_h)))

    comb2 = jnp.stack([prep_half(comb_all[:, :, :n_X], n_X),
                       prep_half(comb_all[:, :, n_X:], n_Y)],
                      axis=0).astype(stream_dtype)       # (2, d+1, r, S_pad)

    # NOTE: stream_dtype=jnp.bfloat16 halves HBM traffic for the jac-dominated
    # stream (accumulation stays f32 in-kernel); kept f32 by default to
    # preserve the module's numerics.
    w = weights.astype(jnp.float32)
    w2 = jnp.stack([jnp.pad(w[:n_X], (0, S_pad - n_X)),
                    jnp.pad(w[n_X:], (0, S_pad - n_Y))],
                   axis=0)[:, None, :]                   # (2, 1, S_pad)

    cov_raw, dcov_raw = fused_weighted_grams(
        comb2, w2, block_n=bn, vmem_limit=vmem_limit)

    def norm(m, h_idx, nn):
        return (nn / (nn - 1)) * m[h_idx] / nn

    cov_X, cov_Y = norm(cov_raw, 0, n_X), norm(cov_raw, 1, n_Y)
    dcov_X, dcov_Y = norm(dcov_raw, 0, n_X), norm(dcov_raw, 1, n_Y)

    return _loss_tail(cov_X, cov_Y, dcov_X, dcov_Y, lambdas, eta, gamma)


# ---------------------------------------------------------------------------
# Reference (mirrors the PyTorch code; covariances + tail in float64 numpy)
# ---------------------------------------------------------------------------
def ref_forward(params, data, weights, lambdas, *, eta, friction, gamma, cell):
    output = np.asarray(model_apply(params, data), np.float64)      # (n, r)
    n, r = output.shape
    ss = n // 2
    grad = jax.vmap(jax.jacfwd(lambda xi: model_apply(params, xi)))(data)
    grad = np.asarray(grad, np.float64).reshape(n, r, -1)           # (n, r, d)
    if cell is not None:
        grad = grad / cell
    gp = grad * friction
    w = np.asarray(weights, np.float64)

    def cov2(X, ww):
        m = X.shape[0]
        return m / (m - 1) * np.einsum('ij,ik,i->jk', X, X, ww) / m

    def cov3(X, ww):
        m = X.shape[0]
        return m / (m - 1) * np.einsum('ijk,ilk,i->jl', X, X, ww) / m

    covX, covY = cov2(output[:ss], w[:ss]), cov2(output[ss:], w[ss:])
    dcovX, dcovY = cov3(gp[:ss], w[:ss]), cov3(gp[ss:], w[ss:])
    L = np.diag(np.asarray(lambdas, np.float64) ** 2)
    W1 = (eta * covX + dcovX) @ L
    W2 = (eta * covY + dcovY) @ L
    eye = np.eye(r)
    loss_ef = np.trace((covX @ L @ W2 + covY @ L @ W1) / 2
                       - covX @ L - covY @ L)
    loss_ortho = gamma * np.trace((eye - covX).T @ (eye - covX))
    return loss_ef + loss_ortho, loss_ef, loss_ortho


if __name__ == "__main__":
    key = jax.random.PRNGKey(0)
    kd1, kw1, kd2, kw2, kl, kp = jax.random.split(key, 6)

    d, r, hidden = 6, 4, 32
    eta, friction, gamma = 0.01, 0.5, 100.0
    params = init_model_params(kp, d, hidden, r)
    lambdas = 10.0 * jax.random.normal(kl, (r,), jnp.float32)   # ~ Parameter(10*randn)

    def check(data, weights, cell, block_n):
        got = generator_loss_forward(params, data, weights, lambdas,
                                     eta=eta, friction=friction, gamma=gamma,
                                     cell=cell, block_n=block_n)
        jax.block_until_ready(got)
        exp = ref_forward(params, data, weights, lambdas,
                          eta=eta, friction=friction, gamma=gamma, cell=cell)
        got = np.array([float(v) for v in got])
        exp = np.array([float(v) for v in exp])
        assert np.allclose(got, exp, rtol=2e-3, atol=2e-3), (got, exp)

    # 1) tiny case, auto block size (single grid step per half), periodic cell.
    data1 = jax.random.normal(kd1, (16, d), jnp.float32)
    weights1 = jnp.abs(jax.random.normal(kw1, (16,), jnp.float32)) + 0.5
    check(data1, weights1, cell=2.0, block_n=None)

    # 2) odd n -> ragged halves, forced small block -> exercises zero-weight
    #    padding + multi-block accumulation across the "arbitrary" axis.
    data2 = jax.random.normal(kd2, (641, d), jnp.float32)
    weights2 = jnp.abs(jax.random.normal(kw2, (641,), jnp.float32)) + 0.5
    check(data2, weights2, cell=None, block_n=128)

    print("KERNEL_OK")
</pallas_src>

<mosaic_0001>
module attributes {stable_mosaic.version = 11 : i64} {
  func.func @_fused_gram_kernel(%arg0: i32, %arg1: i32, %arg2: memref<1x7x4x128xf32, #tpu.memory_space<vmem>>, %arg3: memref<1x1x128xf32, #tpu.memory_space<vmem>>, %arg4: memref<1x4x4xf32, #tpu.memory_space<vmem>>, %arg5: memref<1x4x4xf32, #tpu.memory_space<vmem>>) attributes {dimension_semantics = [#tpu.dimension_semantics<parallel>, #tpu.dimension_semantics<arbitrary>], iteration_bounds = array<i64: 2, 1>, scalar_prefetch = 0 : i64, scratch_operands = 0 : i64, tpu.core_type = #tpu.core_type<tc>, window_params = [{transform_indices = @transform_0, window_bounds = array<i64: 1, 7, 4, 128>}, {transform_indices = @transform_1, window_bounds = array<i64: 1, 1, 128>}, {transform_indices = @transform_2, window_bounds = array<i64: 1, 4, 4>}, {transform_indices = @transform_3, window_bounds = array<i64: 1, 4, 4>}]} {
    %c0_i32 = arith.constant 0 : i32
    %0 = arith.cmpi eq, %arg1, %c0_i32 : i32
    %1 = arith.extui %0 : i1 to i32
    %c0_i32_0 = arith.constant 0 : i32
    %2 = arith.cmpi ne, %1, %c0_i32_0 : i32
    scf.if %2 {
      %cst_20 = arith.constant 0.000000e+00 : f32
      %25 = vector.broadcast %cst_20 : f32 to vector<1x4x4xf32>
      %c0_21 = arith.constant 0 : index
      %c0_22 = arith.constant 0 : index
      %c0_23 = arith.constant 0 : index
      %26 = vector.load %arg4[%c0_21, %c0_22, %c0_23] : memref<1x4x4xf32, #tpu.memory_space<vmem>>, vector<1x4x4xf32>
      tpu.vector_store %arg4[%c0_21, %c0_22, %c0_23], %25 {strides = array<i32>} : memref<1x4x4xf32, #tpu.memory_space<vmem>>, vector<1x4x4xf32>,
      %cst_24 = arith.constant 0.000000e+00 : f32
      %27 = vector.broadcast %cst_24 : f32 to vector<1x4x4xf32>
      %c0_25 = arith.constant 0 : index
      %c0_26 = arith.constant 0 : index
      %c0_27 = arith.constant 0 : index
      %28 = vector.load %arg5[%c0_25, %c0_26, %c0_27] : memref<1x4x4xf32, #tpu.memory_space<vmem>>, vector<1x4x4xf32>
      tpu.vector_store %arg5[%c0_25, %c0_26, %c0_27], %27 {strides = array<i32>} : memref<1x4x4xf32, #tpu.memory_space<vmem>>, vector<1x4x4xf32>,
    } else {
    }
    %c0 = arith.constant 0 : index
    %c0_1 = arith.constant 0 : index
    %c0_2 = arith.constant 0 : index
    %c0_3 = arith.constant 0 : index
    %3 = vector.load %arg2[%c0, %c0_1, %c0_2, %c0_3] : memref<1x7x4x128xf32, #tpu.memory_space<vmem>>, vector<1x7x4x128xf32>
    %4 = vector.shape_cast %3 : vector<1x7x4x128xf32> to vector<7x4x128xf32>
    %c0_4 = arith.constant 0 : index
    %c0_5 = arith.constant 0 : index
    %c0_6 = arith.constant 0 : index
    %5 = vector.load %arg3[%c0_4, %c0_5, %c0_6] : memref<1x1x128xf32, #tpu.memory_space<vmem>>, vector<1x1x128xf32>
    %6 = vector.broadcast %5 : vector<1x1x128xf32> to vector<7x4x128xf32>
    %7 = arith.mulf %4, %6 : vector<7x4x128xf32>
    %cst = arith.constant dense<0.000000e+00> : vector<7x4x4xf32>
    %8 = tpu.matmul %7, %4, %cst {dimension_numbers = #tpu.dot_dimension_numbers<[2], [2], [1], [1], [0, 0, 0, 1, 1, 1], [0], [0]>} : vector<7x4x128xf32>, vector<7x4x128xf32>, vector<7x4x4xf32> -> vector<7x4x4xf32>
    %c0_7 = arith.constant 0 : index
    %c0_8 = arith.constant 0 : index
    %c0_9 = arith.constant 0 : index
    %9 = vector.load %arg4[%c0_7, %c0_8, %c0_9] : memref<1x4x4xf32, #tpu.memory_space<vmem>>, vector<1x4x4xf32>
    %10 = vector.shape_cast %9 : vector<1x4x4xf32> to vector<4x4xf32>
    %11 = vector.extract_strided_slice %8 {offsets = [0, 0, 0], sizes = [1, 4, 4], strides = [1, 1, 1]} : vector<7x4x4xf32> to vector<1x4x4xf32>
    %12 = vector.shape_cast %11 : vector<1x4x4xf32> to vector<4x4xf32>
    %13 = arith.addf %10, %12 : vector<4x4xf32>
    %c0_10 = arith.constant 0 : index
    %c0_11 = arith.constant 0 : index
    %c0_12 = arith.constant 0 : index
    %14 = vector.load %arg4[%c0_10, %c0_11, %c0_12] : memref<1x4x4xf32, #tpu.memory_space<vmem>>, vector<1x4x4xf32>
    %15 = vector.shape_cast %14 : vector<1x4x4xf32> to vector<4x4xf32>
    %16 = vector.shape_cast %13 : vector<4x4xf32> to vector<1x4x4xf32>
    tpu.vector_store %arg4[%c0_10, %c0_11, %c0_12], %16 {strides = array<i32>} : memref<1x4x4xf32, #tpu.memory_space<vmem>>, vector<1x4x4xf32>,
    %c0_13 = arith.constant 0 : index
    %c0_14 = arith.constant 0 : index
    %c0_15 = arith.constant 0 : index
    %17 = vector.load %arg5[%c0_13, %c0_14, %c0_15] : memref<1x4x4xf32, #tpu.memory_space<vmem>>, vector<1x4x4xf32>
    %18 = vector.shape_cast %17 : vector<1x4x4xf32> to vector<4x4xf32>
    %19 = vector.extract_strided_slice %8 {offsets = [1, 0, 0], sizes = [6, 4, 4], strides = [1, 1, 1]} : vector<7x4x4xf32> to vector<6x4x4xf32>
    %cst_16 = arith.constant dense<0.000000e+00> : vector<4x4xf32>
    %20 = vector.multi_reduction <add>, %19, %cst_16 [0] : vector<6x4x4xf32> to vector<4x4xf32>
    %21 = arith.addf %18, %20 : vector<4x4xf32>
    %c0_17 = arith.constant 0 : index
    %c0_18 = arith.constant 0 : index
    %c0_19 = arith.constant 0 : index
    %22 = vector.load %arg5[%c0_17, %c0_18, %c0_19] : memref<1x4x4xf32, #tpu.memory_space<vmem>>, vector<1x4x4xf32>
    %23 = vector.shape_cast %22 : vector<1x4x4xf32> to vector<4x4xf32>
    %24 = vector.shape_cast %21 : vector<4x4xf32> to vector<1x4x4xf32>
    tpu.vector_store %arg5[%c0_17, %c0_18, %c0_19], %24 {strides = array<i32>} : memref<1x4x4xf32, #tpu.memory_space<vmem>>, vector<1x4x4xf32>,
    return
  }
  func.func @transform_0(%arg0: i32, %arg1: i32) -> (i32, i32, i32, i32) {
    %c0_i32 = arith.constant 0 : i32
    %c0_i32_0 = arith.constant 0 : i32
    %c0_i32_1 = arith.constant 0 : i32
    return %arg0, %c0_i32, %c0_i32_0, %arg1 : i32, i32, i32, i32
  }
  func.func @transform_1(%arg0: i32, %arg1: i32) -> (i32, i32, i32) {
    %c0_i32 = arith.constant 0 : i32
    %c0_i32_0 = arith.constant 0 : i32
    return %arg0, %c0_i32, %arg1 : i32, i32, i32
  }
  func.func @transform_2(%arg0: i32, %arg1: i32) -> (i32, i32, i32) {
    %c0_i32 = arith.constant 0 : i32
    %c0_i32_0 = arith.constant 0 : i32
    %c0_i32_1 = arith.constant 0 : i32
    return %arg0, %c0_i32, %c0_i32_0 : i32, i32, i32
  }
  func.func @transform_3(%arg0: i32, %arg1: i32) -> (i32, i32, i32) {
    %c0_i32 = arith.constant 0 : i32
    %c0_i32_0 = arith.constant 0 : i32
    %c0_i32_1 = arith.constant 0 : i32
    return %arg0, %c0_i32, %c0_i32_0 : i32, i32, i32
  }
}

</mosaic_0001>

<llo_original>
// kernel: tpu_custom_call.1
$region0: #{tpu_custom_call.1}
  #allocation0 [shape = 'u32[]', space=smem, size = 0x4, offset = 0x4, fixed_abs, tag = 'smem constant byte address 0x4 - core index']
  #allocation1 [shape = 'u32[72,128]{1,0:T(1,128)}', space=vmem, size = 0x9000, scoped, tag = 'internal scratch']
  %s0 = inlined_call_operand.hbm [shape: f32[2,7,4,128], index: 0, kind: input, shape index: {}]
  %s1 = inlined_call_operand.hbm [shape: f32[2,1,128], index: 1, kind: input, shape index: {}]
  %s2 = inlined_call_operand.hbm [shape: f32[2,4,4], index: 2, kind: output, shape index: {0}]
  %s3 = inlined_call_operand.hbm [shape: f32[2,4,4], index: 3, kind: output, shape index: {1}]
  %4 = xla_tuple %s2, %s3
  %s5 = sld [smem:[#allocation0]]
  $region61: #{tpu_custom_call.1} parent=0
    _
  %s7 = ssub.s32 1, %s5
  %s8 = scalar_select 0, %s7, %s5
  $region1: #{tpu_custom_call.1} parent=0
    #allocation2 [shape = 'u8[28672]{0}', space=vmem, size = 0x7000, scoped, tag = 'input window, operand 0']
    #allocation3 [shape = 's32[2]{0}', space=sflag, size = 0x8, scoped, tag = 'scoped memory for tpu_custom_call.1']
    #allocation4 [shape = 's32[2]{0}', space=sflag, size = 0x8, scoped, tag = 'scoped memory for tpu_custom_call.1']
    #allocation5 [shape = 'u8[1024]{0}', space=vmem, size = 0x400, scoped, tag = 'input window, operand 1']
    #allocation6 [shape = 's32[2]{0}', space=sflag, size = 0x8, scoped, tag = 'scoped memory for tpu_custom_call.1']
    #allocation7 [shape = 'u8[4096]{0}', space=vmem, size = 0x1000, scoped, tag = 'output window, operand 0']
    #allocation8 [shape = 'u8[4096]{0}', space=vmem, size = 0x1000, scoped, tag = 'output window, operand 1']
    #allocation9 [shape = 's32[2]{0}', space=sflag, size = 0x8, scoped, tag = 'scoped memory for tpu_custom_call.1']
    %9 = vsyncpa [#allocation3], 0
    %s10 = scalar_lea.sflag [#allocation3], 1
    %11 = vsyncpa %s10, 0
    %12 = vsyncpa [#allocation6], 0
    %s13 = scalar_lea.sflag [#allocation6], 1
    %14 = vsyncpa %s13, 0
    %15 = vsyncpa [#allocation4], 0
    %s16 = scalar_lea.sflag [#allocation4], 1
    %17 = vsyncpa %s16, 0
    %18 = vsyncpa [#allocation9], 0
    %s19 = scalar_lea.sflag [#allocation9], 1
    %20 = vsyncpa %s19, 0
    loop: start=0, step=1, limit=4
    $region2: #{tpu_custom_call.1} parent=1 // loop_pre_header
      _
    $region3: #{tpu_custom_call.1} parent=1 // loop_header
      %s22 = sphi 0, %s26
      %p23 = scmp.ge.s32.totalorder %s22, 4
      %s29 = sphi 0, %s41
      %s30 = sphi 0, %s37
      %s31 = sphi 0, %s29
      %s32 = sphi 0, %s30
      %s33 = sphi 0, %s31
      %s34 = sphi 0, %s32
      %s46 = sphi 0, %s48
      %s49 = sphi 0, %s46
      %s50 = sphi 0, %s49
      %s66 = sphi 0, %s50
      %s74 = sphi 0, %s76
      %s77 = sphi 0, %s74
      %s78 = sphi 0, %s77
      %s94 = sphi 0, %s78
      %s100 = sphi 0, %s102
      %s103 = sphi 0, %s100
      %s104 = sphi 0, %s103
      %s120 = sphi 0, %s104
      %s126 = sphi 0, %s128
      %s129 = sphi 0, %s126
      %s130 = sphi 0, %s129
      %s146 = sphi 0, %s130
    $region4: #{tpu_custom_call.1} parent=1 // loop_header_branch
      %25 = sbr.rel (%p23) target = $region8
    $region5: #{tpu_custom_call.1} parent=1 // loop_body
      %s27 = ssub.s32 %s22, 1
      %s28 = ssub.s32 %s22, 2
      %s35 = sadd.s32 1, %s30
      %p36 = scmp.ge.s32.totalorder %s35, 1
      %s37 = scalar_select %p36, 0, %s35
      %s38 = sadd.s32 1, %s29
      %s39 = scalar_select %p36, %s38, %s29
      %p40 = scmp.ge.s32.totalorder %s39, 2
      %s41 = scalar_select %p40, 0, %s39
      %s42 = ssub.s32 %s29, %s41
      %s43 = ssub.s32 %s30, %s37
      %s44 = sor.u32 %s42, %s43
      %p45 = scmp.eq.s32.totalorder %s44, 0
      %s47 = sadd.s32 %s46, 1
      %s48 = scalar_select %p45, %s46, %s47
      %p51 = pneg %p45
      %p52 = scmp.eq.s32.totalorder %s22, 1
      %p53 = por %p51, %p52
      %p54 = scmp.ne.s32.totalorder %s46, %s49
      %p55 = scmp.eq.s32.totalorder %s22, 0
      %p56 = por %p54, %p55
      %p57 = scmp.ne.s32.totalorder %s46, %s49
      %p58 = scmp.eq.s32.totalorder %s27, 1
      %p59 = por %p57, %p58
      %p60 = scmp.ne.s32.totalorder %s49, %s50
      %p61 = scmp.eq.s32.totalorder %s27, 0
      %p62 = por %p60, %p61
      %p63 = scmp.ne.s32.totalorder %s49, %s50
      %p64 = scmp.eq.s32.totalorder %s28, 1
      %p65 = por %p63, %p64
      %p67 = scmp.ne.s32.totalorder %s50, %s66
      %p68 = scmp.eq.s32.totalorder %s28, 0
      %p69 = por %p67, %p68
      %s70 = ssub.s32 %s29, %s41
      %s71 = ssub.s32 %s30, %s37
      %s72 = sor.u32 %s70, %s71
      %p73 = scmp.eq.s32.totalorder %s72, 0
      %s75 = sadd.s32 %s74, 1
      %s76 = scalar_select %p73, %s74, %s75
      %p79 = pneg %p73
      %p80 = scmp.eq.s32.totalorder %s22, 1
      %p81 = por %p79, %p80
      %p82 = scmp.ne.s32.totalorder %s74, %s77
      %p83 = scmp.eq.s32.totalorder %s22, 0
      %p84 = por %p82, %p83
      %p85 = scmp.ne.s32.totalorder %s74, %s77
      %p86 = scmp.eq.s32.totalorder %s27, 1
      %p87 = por %p85, %p86
      %p88 = scmp.ne.s32.totalorder %s77, %s78
      %p89 = scmp.eq.s32.totalorder %s27, 0
      %p90 = por %p88, %p89
      %p91 = scmp.ne.s32.totalorder %s77, %s78
      %p92 = scmp.eq.s32.totalorder %s28, 1
      %p93 = por %p91, %p92
      %p95 = scmp.ne.s32.totalorder %s78, %s94
      %p96 = scmp.eq.s32.totalorder %s28, 0
      %p97 = por %p95, %p96
      %s98 = ssub.s32 %s29, %s41
      %p99 = scmp.eq.s32.totalorder %s98, 0
      %s101 = sadd.s32 %s100, 1
      %s102 = scalar_select %p99, %s100, %s101
      %p105 = pneg %p99
      %p106 = scmp.eq.s32.totalorder %s22, 1
      %p107 = por %p105, %p106
      %p108 = scmp.ne.s32.totalorder %s100, %s103
      %p109 = scmp.eq.s32.totalorder %s22, 0
      %p110 = por %p108, %p109
      %p111 = scmp.ne.s32.totalorder %s100, %s103
      %p112 = scmp.eq.s32.totalorder %s27, 1
      %p113 = por %p111, %p112
      %p114 = scmp.ne.s32.totalorder %s103, %s104
      %p115 = scmp.eq.s32.totalorder %s27, 0
      %p116 = por %p114, %p115
      %p117 = scmp.ne.s32.totalorder %s103, %s104
      %p118 = scmp.eq.s32.totalorder %s28, 1
      %p119 = por %p117, %p118
      %p121 = scmp.ne.s32.totalorder %s104, %s120
      %p122 = scmp.eq.s32.totalorder %s28, 0
      %p123 = por %p121, %p122
      %s124 = ssub.s32 %s29, %s41
      %p125 = scmp.eq.s32.totalorder %s124, 0
      %s127 = sadd.s32 %s126, 1
      %s128 = scalar_select %p125, %s126, %s127
      %p131 = pneg %p125
      %p132 = scmp.eq.s32.totalorder %s22, 1
      %p133 = por %p131, %p132
      %p134 = scmp.ne.s32.totalorder %s126, %s129
      %p135 = scmp.eq.s32.totalorder %s22, 0
      %p136 = por %p134, %p135
      %p137 = scmp.ne.s32.totalorder %s126, %s129
      %p138 = scmp.eq.s32.totalorder %s27, 1
      %p139 = por %p137, %p138
      %p140 = scmp.ne.s32.totalorder %s129, %s130
      %p141 = scmp.eq.s32.totalorder %s27, 0
      %p142 = por %p140, %p141
      %p143 = scmp.ne.s32.totalorder %s129, %s130
      %p144 = scmp.eq.s32.totalorder %s28, 1
      %p145 = por %p143, %p144
      %p147 = scmp.ne.s32.totalorder %s130, %s146
      %p148 = scmp.eq.s32.totalorder %s28, 0
      %p149 = por %p147, %p148
      %p150 = scmp.le.s32.totalorder 1, %s22
      %p151 = scmp.lt.s32.totalorder %s22, 3
      %p152 = pnand %p150, %p151
      %p153 = pneg %p152
      // Predicated region
      $region9: #{tpu_custom_call.1} parent=5 // pred_check
        _
      $region10: #{tpu_custom_call.1} parent=5 // pred_check_branch
        %155 = sbr.rel (%p152) target = $region12
      $region11: #{tpu_custom_call.1} parent=5 // pred_region
        %s156 = ssub.s32 %s22, 1
      $region12: #{tpu_custom_call.1} parent=5 // pred_fallthru
        _
      %p157 = scmp.lt.s32.totalorder %s22, 2
      // Predicated region
      $region13: #{tpu_custom_call.1} parent=5 // pred_check
        %p158 = pneg %p157
      $region14: #{tpu_custom_call.1} parent=5 // pred_check_branch
        %160 = sbr.rel (%p158) target = $region16
      $region15: #{tpu_custom_call.1} parent=5 // pred_region
        // Predicated region
        $region17: #{tpu_custom_call.1} parent=15 // pred_check
          %p161 = pneg %p56
        $region18: #{tpu_custom_call.1} parent=15 // pred_check_branch
          %163 = sbr.rel (%p161) target = $region20
        $region19: #{tpu_custom_call.1} parent=15 // pred_region
          %s164 = sand.u32 %s46, 1
          %s165 = scalar_lea.sflag [#allocation3], %s164
          %s166 = sand.u32 %s46, 1
          %s167 = smul.addr %s166, 28
          %s168 = scalar_lea.vmem [#allocation2], %s167
          %170 = vsyncadd %s165, 0
          %s171 = smul.addr %s29, 7
          %s172 = sadd.s32 %s30, %s171
          %s173 = smul.addr %s172, 4
          %s174 = scalar_lea.hbm %s0, %s173
          %s175 = sshll.u32 %s174, 4
          %s176 = int_to_ptr.hbm [resolvable:$true] %s175
          %s177 = sshll.u32 %s168, 4
          %s178 = int_to_ptr.vmem [resolvable:$true] %s177
          %183 = dma.hbm_to_vmem [thread:$0]  %s176, 448, %s178, %s165, 64, 64, 4
        $region20: #{tpu_custom_call.1} parent=15 // pred_fallthru
          _
        // Predicated region
        $region21: #{tpu_custom_call.1} parent=15 // pred_check
          %p184 = pneg %p84
        $region22: #{tpu_custom_call.1} parent=15 // pred_check_branch
          %186 = sbr.rel (%p184) target = $region24
        $region23: #{tpu_custom_call.1} parent=15 // pred_region
          %s187 = sand.u32 %s74, 1
          %s188 = scalar_lea.sflag [#allocation6], %s187
          %s189 = sand.u32 %s74, 1
          %s190 = scalar_lea.vmem [#allocation5], %s189
          %192 = vsyncadd %s188, 0
          %s193 = sadd.s32 %s30, %s29
          %s194 = scalar_lea.hbm %s1, %s193
          %s196 = sshll.u32 %s194, 4
          %s197 = int_to_ptr.hbm [resolvable:$true] %s196
          %s198 = sshll.u32 %s190, 4
          %s199 = int_to_ptr.vmem [resolvable:$true] %s198
          %201 = dma.hbm_to_vmem [thread:$0]  %s197, 16, %s199, %s188
        $region24: #{tpu_custom_call.1} parent=15 // pred_fallthru
          _
      $region16: #{tpu_custom_call.1} parent=5 // pred_fallthru
        _
      %p202 = scmp.le.s32.totalorder 1, %s22
      %p203 = scmp.lt.s32.totalorder %s22, 3
      %p204 = pnand %p202, %p203
      %p205 = pneg %p204
      // Predicated region
      $region25: #{tpu_custom_call.1} parent=5 // pred_check
        _
      $region26: #{tpu_custom_call.1} parent=5 // pred_check_branch
        %207 = sbr.rel (%p204) target = $region28
      $region27: #{tpu_custom_call.1} parent=5 // pred_region
        %s208 = ssub.s32 %s22, 1
        %s209 = sand.u32 %s49, 1
        %s210 = scalar_lea.sflag [#allocation3], %s209
        %s211 = sand.u32 %s49, 1
        %s212 = smul.addr %s211, 28
        %s213 = scalar_lea.vmem [#allocation2], %s212
        // Predicated region
        $region29: #{tpu_custom_call.1} parent=27 // pred_check
          %p214 = pneg %p62
        $region30: #{tpu_custom_call.1} parent=27 // pred_check_branch
          %216 = sbr.rel (%p214) target = $region32
        $region31: #{tpu_custom_call.1} parent=27 // pred_region
          %218 = dma.done %s210, 448
        $region32: #{tpu_custom_call.1} parent=27 // pred_fallthru
          _
        %s219 = sand.u32 %s77, 1
        %s220 = scalar_lea.sflag [#allocation6], %s219
        %s221 = sand.u32 %s77, 1
        %s222 = scalar_lea.vmem [#allocation5], %s221
        // Predicated region
        $region33: #{tpu_custom_call.1} parent=27 // pred_check
          %p223 = pneg %p90
        $region34: #{tpu_custom_call.1} parent=27 // pred_check_branch
          %225 = sbr.rel (%p223) target = $region36
        $region35: #{tpu_custom_call.1} parent=27 // pred_region
          %227 = dma.done %s220, 16
        $region36: #{tpu_custom_call.1} parent=27 // pred_fallthru
          _
        %s228 = sand.u32 %s49, 1
        %s229 = scalar_lea.sflag [#allocation3], %s228
        %s230 = sand.u32 %s49, 1
        %s231 = smul.addr %s230, 28
        %s232 = scalar_lea.vmem [#allocation2], %s231
        %p233 = pneg %p62
        %p234 = pneg %p59
        %s235 = sand.u32 %s77, 1
        %s236 = scalar_lea.sflag [#allocation6], %s235
        %s237 = sand.u32 %s77, 1
        %s238 = scalar_lea.vmem [#allocation5], %s237
        %p239 = pneg %p90
        %p240 = pneg %p87
        %p241 = pneg %p116
        %p242 = pneg %p113
        %s243 = sand.u32 %s103, 1
        %s244 = scalar_lea.sflag [#allocation4], %s243
        %s245 = sand.u32 %s103, 1
        %s246 = smul.addr %s245, 4
        %s247 = scalar_lea.vmem [#allocation7], %s246
        %p248 = pneg %p142
        %p249 = pneg %p139
        %s250 = sand.u32 %s129, 1
        %s251 = scalar_lea.sflag [#allocation9], %s250
        %s252 = sand.u32 %s129, 1
        %s253 = smul.addr %s252, 4
        %s254 = scalar_lea.vmem [#allocation8], %s253
        %p255 = scmp.eq.s32.totalorder %s32, 0
        // Predicated region
        $region37: #{tpu_custom_call.1} parent=27 // pred_check
          %p256 = pneg %p255
        $region38: #{tpu_custom_call.1} parent=27 // pred_check_branch
          %258 = sbr.rel (%p256) target = $region40
        $region39: #{tpu_custom_call.1} parent=27 // pred_region
          %vm259 = vcmask 27648
          %260 = vst.msk [vmem:[%s247] sm:$0xf] %vm259, 0.0
          %261 = vst.msk [vmem:[%s254] sm:$0xf] %vm259, 0.0
        $region40: #{tpu_custom_call.1} parent=27 // pred_fallthru
          _
        %v262 = vld [vmem:[%s213] sm:$0xf]
        %v263 = vld [vmem:[%s213 + $0x4] sm:$0xf]
        %v264 = vld [vmem:[%s213 + $0x8] sm:$0xf]
        %v265 = vld [vmem:[%s213 + $0xc] sm:$0xf]
        %v266 = vld [vmem:[%s213 + $0x10] sm:$0xf]
        %v267 = vld [vmem:[%s213 + $0x14] sm:$0xf]
        %v268 = vld [vmem:[%s213 + $0x18] sm:$0xf]
        %v269 = vld [vmem:[%s222] sm:$0x1]
        %v271 = vperm.slane %v269, 0
        %v273 = vmul.f32 %v262, %v271
        %v274 = vmul.f32 %v263, %v271
        %v275 = vmul.f32 %v264, %v271
        %v276 = vmul.f32 %v265, %v271
        %v277 = vmul.f32 %v266, %v271
        %v278 = vmul.f32 %v267, %v271
        %v279 = vmul.f32 %v268, %v271
        %280 = vmatpush.xpose.msra.mxu0 0.0
        %281 = vmatpush.xpose.msra.mxu0 0.0
        %282 = vmatpush.xpose.msra.mxu0 0.0
        %283 = vmatpush.xpose.msra.mxu0 0.0
        %284 = vmatpush.xpose.msra.mxu0 0.0
        %285 = vmatpush.xpose.msra.mxu0 0.0
        %286 = vmatpush.xpose.msra.mxu0 0.0
        %287 = vmatpush.xpose.msra.mxu0 0.0
        %288 = vmatpush.xpose.msra.mxu0 0.0
        %289 = vmatpush.xpose.msra.mxu0 0.0
        %290 = vmatpush.xpose.msra.mxu0 0.0
        %291 = vmatpush.xpose.msra.mxu0 0.0
        %292 = vmatpush.xpose.msra.mxu0 0.0
        %293 = vmatpush.xpose.msra.mxu0 0.0
        %294 = vmatpush.xpose.msra.mxu0 0.0
        %295 = vmatpush.xpose.msra.mxu0 %v262
        %296 = vmatmul.f32.gmra.mxu0 %v273
        %v297 = vpop.f32.mrf.mxu0
        %v298 = vadd.f32 0.0, %v297
        %299 = vdwg.mxu0
        %300 = vmatpush.xpose.msra.mxu0 0.0
        %301 = vmatpush.xpose.msra.mxu0 0.0
        %302 = vmatpush.xpose.msra.mxu0 0.0
        %303 = vmatpush.xpose.msra.mxu0 0.0
        %304 = vmatpush.xpose.msra.mxu0 0.0
        %305 = vmatpush.xpose.msra.mxu0 0.0
        %306 = vmatpush.xpose.msra.mxu0 0.0
        %307 = vmatpush.xpose.msra.mxu0 0.0
        %308 = vmatpush.xpose.msra.mxu0 0.0
        %309 = vmatpush.xpose.msra.mxu0 0.0
        %310 = vmatpush.xpose.msra.mxu0 0.0
        %311 = vmatpush.xpose.msra.mxu0 0.0
        %312 = vmatpush.xpose.msra.mxu0 0.0
        %313 = vmatpush.xpose.msra.mxu0 0.0
        %314 = vmatpush.xpose.msra.mxu0 0.0
        %315 = vmatpush.xpose.msra.mxu0 %v263
        %316 = vmatmul.f32.gmra.mxu0 %v274
        %v317 = vpop.f32.mrf.mxu0
        %v318 = vadd.f32 0.0, %v317
        %319 = vdwg.mxu0
        %320 = vmatpush.xpose.msra.mxu0 0.0
        %321 = vmatpush.xpose.msra.mxu0 0.0
        %322 = vmatpush.xpose.msra.mxu0 0.0
        %323 = vmatpush.xpose.msra.mxu0 0.0
        %324 = vmatpush.xpose.msra.mxu0 0.0
        %325 = vmatpush.xpose.msra.mxu0 0.0
        %326 = vmatpush.xpose.msra.mxu0 0.0
        %327 = vmatpush.xpose.msra.mxu0 0.0
        %328 = vmatpush.xpose.msra.mxu0 0.0
        %329 = vmatpush.xpose.msra.mxu0 0.0
        %330 = vmatpush.xpose.msra.mxu0 0.0
        %331 = vmatpush.xpose.msra.mxu0 0.0
        %332 = vmatpush.xpose.msra.mxu0 0.0
        %333 = vmatpush.xpose.msra.mxu0 0.0
        %334 = vmatpush.xpose.msra.mxu0 0.0
        %335 = vmatpush.xpose.msra.mxu0 %v264
        %336 = vmatmul.f32.gmra.mxu0 %v275
        %v337 = vpop.f32.mrf.mxu0
        %v338 = vadd.f32 0.0, %v337
        %339 = vdwg.mxu0
        %340 = vmatpush.xpose.msra.mxu0 0.0
        %341 = vmatpush.xpose.msra.mxu0 0.0
        %342 = vmatpush.xpose.msra.mxu0 0.0
        %343 = vmatpush.xpose.msra.mxu0 0.0
        %344 = vmatpush.xpose.msra.mxu0 0.0
        %345 = vmatpush.xpose.msra.mxu0 0.0
        %346 = vmatpush.xpose.msra.mxu0 0.0
        %347 = vmatpush.xpose.msra.mxu0 0.0
        %348 = vmatpush.xpose.msra.mxu0 0.0
        %349 = vmatpush.xpose.msra.mxu0 0.0
        %350 = vmatpush.xpose.msra.mxu0 0.0
        %351 = vmatpush.xpose.msra.mxu0 0.0
        %352 = vmatpush.xpose.msra.mxu0 0.0
        %353 = vmatpush.xpose.msra.mxu0 0.0
        %354 = vmatpush.xpose.msra.mxu0 0.0
        %355 = vmatpush.xpose.msra.mxu0 %v265
        %356 = vmatmul.f32.gmra.mxu0 %v276
        %v357 = vpop.f32.mrf.mxu0
        %v358 = vadd.f32 0.0, %v357
        %359 = vdwg.mxu0
        %360 = vmatpush.xpose.msra.mxu0 0.0
        %361 = vmatpush.xpose.msra.mxu0 0.0
        %362 = vmatpush.xpose.msra.mxu0 0.0
        %363 = vmatpush.xpose.msra.mxu0 0.0
        %364 = vmatpush.xpose.msra.mxu0 0.0
        %365 = vmatpush.xpose.msra.mxu0 0.0
        %366 = vmatpush.xpose.msra.mxu0 0.0
        %367 = vmatpush.xpose.msra.mxu0 0.0
        %368 = vmatpush.xpose.msra.mxu0 0.0
        %369 = vmatpush.xpose.msra.mxu0 0.0
        %370 = vmatpush.xpose.msra.mxu0 0.0
        %371 = vmatpush.xpose.msra.mxu0 0.0
        %372 = vmatpush.xpose.msra.mxu0 0.0
        %373 = vmatpush.xpose.msra.mxu0 0.0
        %374 = vmatpush.xpose.msra.mxu0 0.0
        %375 = vmatpush.xpose.msra.mxu0 %v266
        %376 = vmatmul.f32.gmra.mxu0 %v277
        %v377 = vpop.f32.mrf.mxu0
        %v378 = vadd.f32 0.0, %v377
        %379 = vdwg.mxu0
        %380 = vmatpush.xpose.msra.mxu0 0.0
        %381 = vmatpush.xpose.msra.mxu0 0.0
        %382 = vmatpush.xpose.msra.mxu0 0.0
        %383 = vmatpush.xpose.msra.mxu0 0.0
        %384 = vmatpush.xpose.msra.mxu0 0.0
        %385 = vmatpush.xpose.msra.mxu0 0.0
        %386 = vmatpush.xpose.msra.mxu0 0.0
        %387 = vmatpush.xpose.msra.mxu0 0.0
        %388 = vmatpush.xpose.msra.mxu0 0.0
        %389 = vmatpush.xpose.msra.mxu0 0.0
        %390 = vmatpush.xpose.msra.mxu0 0.0
        %391 = vmatpush.xpose.msra.mxu0 0.0
        %392 = vmatpush.xpose.msra.mxu0 0.0
        %393 = vmatpush.xpose.msra.mxu0 0.0
        %394 = vmatpush.xpose.msra.mxu0 0.0
        %395 = vmatpush.xpose.msra.mxu0 %v267
        %396 = vmatmul.f32.gmra.mxu0 %v278
        %v397 = vpop.f32.mrf.mxu0
        %v398 = vadd.f32 0.0, %v397
        %399 = vdwg.mxu0
        %400 = vmatpush.xpose.msra.mxu0 0.0
        %401 = vmatpush.xpose.msra.mxu0 0.0
        %402 = vmatpush.xpose.msra.mxu0 0.0
        %403 = vmatpush.xpose.msra.mxu0 0.0
        %404 = vmatpush.xpose.msra.mxu0 0.0
        %405 = vmatpush.xpose.msra.mxu0 0.0
        %406 = vmatpush.xpose.msra.mxu0 0.0
        %407 = vmatpush.xpose.msra.mxu0 0.0
        %408 = vmatpush.xpose.msra.mxu0 0.0
        %409 = vmatpush.xpose.msra.mxu0 0.0
        %410 = vmatpush.xpose.msra.mxu0 0.0
        %411 = vmatpush.xpose.msra.mxu0 0.0
        %412 = vmatpush.xpose.msra.mxu0 0.0
        %413 = vmatpush.xpose.msra.mxu0 0.0
        %414 = vmatpush.xpose.msra.mxu0 0.0
        %415 = vmatpush.xpose.msra.mxu0 %v268
        %416 = vmatmul.f32.gmra.mxu0 %v279
        %v417 = vpop.f32.mrf.mxu0
        %v418 = vadd.f32 0.0, %v417
        %419 = vdwg.mxu0
        %v420 = vld [vmem:[%s247] sm:$0xf]
        %v421 = vadd.f32 %v420, %v298
        %vm422 = vcmask 27648
        %423 = vst.msk [vmem:[%s247] sm:$0xf] %vm422, %v421
        %v424 = vld [vmem:[%s254] sm:$0xf]
        %v425 = vsel %vm422, %v318, 0.0
        %v426 = vsel %vm422, %v338, 0.0
        %v427 = vadd.f32 %v425, %v426
        %v428 = vsel %vm422, %v358, 0.0
        %v429 = vadd.f32 %v427, %v428
        %v430 = vsel %vm422, %v378, 0.0
        %v431 = vadd.f32 %v429, %v430
        %v432 = vsel %vm422, %v398, 0.0
        %v433 = vadd.f32 %v431, %v432
        %v434 = vsel %vm422, %v418, 0.0
        %v435 = vadd.f32 %v433, %v434
        %v436 = vadd.f32 %v424, %v435
        %437 = vst.msk [vmem:[%s254] sm:$0xf] %vm422, %v436
        %s438 = sand.u32 %s103, 1
        %s439 = scalar_lea.sflag [#allocation4], %s438
        %s440 = sand.u32 %s103, 1
        %s441 = smul.addr %s440, 4
        %s442 = scalar_lea.vmem [#allocation7], %s441
        %s443 = sand.u32 %s129, 1
        %s444 = scalar_lea.sflag [#allocation9], %s443
        %s445 = sand.u32 %s129, 1
        %s446 = smul.addr %s445, 4
        %s447 = scalar_lea.vmem [#allocation8], %s446
        // Predicated region
        $region41: #{tpu_custom_call.1} parent=27 // pred_check
          %p448 = pneg %p113
        $region42: #{tpu_custom_call.1} parent=27 // pred_check_branch
          %450 = sbr.rel (%p448) target = $region44
        $region43: #{tpu_custom_call.1} parent=27 // pred_region
          %452 = vsyncadd %s439, 0
          %s453 = smul.addr %s31, 4
          %s454 = scalar_lea.hbm %s2, %s453
          %s456 = sshll.u32 %s442, 4
          %s457 = int_to_ptr.vmem [resolvable:$true] %s456
          %s458 = sshll.u32 %s454, 4
          %s459 = int_to_ptr.hbm [resolvable:$true] %s458
          %461 = dma.vmem_to_hbm [thread:$0]  %s457, 64, %s459, %s439
        $region44: #{tpu_custom_call.1} parent=27 // pred_fallthru
          _
        // Predicated region
        $region45: #{tpu_custom_call.1} parent=27 // pred_check
          %p462 = pneg %p139
        $region46: #{tpu_custom_call.1} parent=27 // pred_check_branch
          %464 = sbr.rel (%p462) target = $region48
        $region47: #{tpu_custom_call.1} parent=27 // pred_region
          %466 = vsyncadd %s444, 0
          %s467 = smul.addr %s31, 4
          %s468 = scalar_lea.hbm %s3, %s467
          %s470 = sshll.u32 %s447, 4
          %s471 = int_to_ptr.vmem [resolvable:$true] %s470
          %s472 = sshll.u32 %s468, 4
          %s473 = int_to_ptr.hbm [resolvable:$true] %s472
          %475 = dma.vmem_to_hbm [thread:$0]  %s471, 64, %s473, %s444
        $region48: #{tpu_custom_call.1} parent=27 // pred_fallthru
          _
      $region28: #{tpu_custom_call.1} parent=5 // pred_fallthru
        _
      %p476 = scmp.le.s32.totalorder 2, %s22
      // Predicated region
      $region49: #{tpu_custom_call.1} parent=5 // pred_check
        %p477 = pneg %p476
      $region50: #{tpu_custom_call.1} parent=5 // pred_check_branch
        %479 = sbr.rel (%p477) target = $region52
      $region51: #{tpu_custom_call.1} parent=5 // pred_region
        %s480 = ssub.s32 %s22, 2
        // Predicated region
        $region53: #{tpu_custom_call.1} parent=51 // pred_check
          %p481 = pneg %p119
        $region54: #{tpu_custom_call.1} parent=51 // pred_check_branch
          %483 = sbr.rel (%p481) target = $region56
        $region55: #{tpu_custom_call.1} parent=51 // pred_region
          %s484 = sand.u32 %s104, 1
          %s485 = scalar_lea.sflag [#allocation4], %s484
          %s486 = sand.u32 %s104, 1
          %s487 = smul.addr %s486, 4
          %s488 = scalar_lea.vmem [#allocation7], %s487
          %490 = dma.done %s485, 64
        $region56: #{tpu_custom_call.1} parent=51 // pred_fallthru
          _
        // Predicated region
        $region57: #{tpu_custom_call.1} parent=51 // pred_check
          %p491 = pneg %p145
        $region58: #{tpu_custom_call.1} parent=51 // pred_check_branch
          %493 = sbr.rel (%p491) target = $region60
        $region59: #{tpu_custom_call.1} parent=51 // pred_region
          %s494 = sand.u32 %s130, 1
          %s495 = scalar_lea.sflag [#allocation9], %s494
          %s496 = sand.u32 %s130, 1
          %s497 = smul.addr %s496, 4
          %s498 = scalar_lea.vmem [#allocation8], %s497
          %500 = dma.done %s495, 64
        $region60: #{tpu_custom_call.1} parent=51 // pred_fallthru
          _
      $region52: #{tpu_custom_call.1} parent=5 // pred_fallthru
        _
    $region6: #{tpu_custom_call.1} parent=1 // loop_footer
      %s26 = sadd.s32 1, %s22
    $region7: #{tpu_custom_call.1} parent=1 // loop_footer_branch
      %21 = sbr.rel target = $region3
    $region8: #{tpu_custom_call.1} parent=1 // loop_exit
      _
    %501 = vsyncpa [#allocation3], 1
    %s502 = scalar_lea.sflag [#allocation3], 1
    %503 = vsyncpa %s502, 1
    %504 = vsyncpa [#allocation6], 1
    %s505 = scalar_lea.sflag [#allocation6], 1
    %506 = vsyncpa %s505, 1
    %507 = vsyncpa [#allocation4], 1
    %s508 = scalar_lea.sflag [#allocation4], 1
    %509 = vsyncpa %s508, 1
    %510 = vsyncpa [#allocation9], 1
    %s511 = scalar_lea.sflag [#allocation9], 1
    %512 = vsyncpa %s511, 1

</llo_original>
